<compile_context>
chip_gen: v6e
topology: v6e:2x2x1
jax: 0.10.0
libtpu: 0.0.40
codegen_flags: <defaults>
</compile_context>

<pallas_src>
from functools import lru_cache

import jax
import jax.numpy as jnp
import numpy as np
from jax.experimental import pallas as pl
from jax.experimental.pallas import tpu as pltpu


def _spatial_broadcast_kernel(x_ref, pe_ref, out_ref):
    """One grid step writes one (block_b, C+2, block_hw) output tile.

    x_ref   : VMEM ref, shape (B, C)                 -- full latent, resident
    pe_ref  : VMEM ref, shape (2, block_hw)          -- positional-grid tile
    out_ref : VMEM ref, shape (block_b, C+2, block_hw)
    """
    bt, _, hwb = out_ref.shape
    c = x_ref.shape[1]
    dt = out_ref.dtype

    # Batch rows owned by this step (cheap in-VMEM dynamic sublane slice).
    b0 = pl.multiple_of(pl.program_id(0) * bt, bt)
    x_blk = x_ref[pl.ds(b0, bt), :]                                   # (bt, C)

    # Positional channels broadcast over batch; latent broadcast over lanes.
    pe_b = jnp.broadcast_to(pe_ref[...][None, :, :], (bt, 2, hwb))    # (bt, 2, hwb)
    feat = jnp.broadcast_to(x_blk[:, :, None], (bt, c, hwb))          # (bt, C, hwb)

    # Single full-tile store (unmasked vst; no sublane-misaligned slices).
    out_ref[...] = jnp.concatenate([pe_b, feat], axis=1).astype(dt)


@lru_cache(maxsize=None)
def _linear_pe_np(h: int, w: int, dtype_name: str) -> np.ndarray:
    """Linear 2-channel positional grid, matching gen_2d_pe('linear').

    Channel 0 = y-coordinate, channel 1 = x-coordinate, each in [-1, 1].
    Built once per (H, W, dtype) on host.
    """
    ys = np.linspace(-1.0, 1.0, h, dtype=np.float32)
    xs = np.linspace(-1.0, 1.0, w, dtype=np.float32)
    gy, gx = np.meshgrid(ys, xs, indexing="ij")
    return np.stack([gy, gx], axis=0).reshape(2, h * w).astype(dtype_name)


def spatial_broadcast(x: jax.Array, sz, *, target_block_bytes: int = 2 << 20) -> jax.Array:
    """Pallas implementation of SpatialBroadcast.forward (pe_type='linear').

    Args:
      x:  (B, C) latent features.
      sz: (H, W) target spatial size.

    Returns:
      (B, C + 2, H, W) broadcast feature map (BCHW).
    """
    H, W = int(sz[0]), int(sz[1])
    B, C = x.shape
    HW = H * W
    C_out = C + 2
    dtype = x.dtype
    itemsize = jnp.dtype(dtype).itemsize

    # ---- block-size selection (even division, lane-multiple-of-128) -------
    per_lane = C_out * itemsize  # bytes per output lane column, one batch elem

    def pick_hw(limit):
        """Largest multiple-of-128 divisor of HW that is <= limit
        (falls back to full HW when HW has no multiple-of-128 divisor)."""
        if HW % 128 != 0:
            return HW
        best, m = 128, 256
        top = min(HW, max(limit, 128))
        while m <= top:
            if HW % m == 0:
                best = m
            m += 128
        return best

    def pick_b(limit):
        """Largest divisor of B that is <= limit."""
        best = 1
        for d in range(1, min(B, max(limit, 1)) + 1):
            if B % d == 0:
                best = d
        return best

    max_lanes = max(128, target_block_bytes // max(per_lane, 1))
    block_hw = pick_hw(max_lanes)
    block_b = pick_b(target_block_bytes // max(per_lane * block_hw, 1))
    grid_b, grid_hw = B // block_b, HW // block_hw

    # v7x megacore: ensure >= 2 grid steps so both TensorCores get work.
    # (Harmless on v5e/v6e: one extra ~0.35 us step.)
    if grid_b * grid_hw < 2:
        if B >= 2:
            block_b = pick_b(B // 2)
        elif HW % 256 == 0:
            block_hw = pick_hw(HW // 2)
        grid_b, grid_hw = B // block_b, HW // block_hw

    # ---- explicit per-step VMEM budget (v7x has only 64 MiB physical) -----
    def _pad(n, m):
        return ((n + m - 1) // m) * m

    sub = 8 * max(1, 4 // itemsize)      # sublane tile: f32 -> 8, bf16 -> 16, i8 -> 32
    out_blk_pad = block_b * _pad(C_out, sub) * _pad(block_hw, 128) * itemsize
    pe_blk_pad = _pad(2, sub) * _pad(block_hw, 128) * itemsize
    x_pad = _pad(B, sub) * _pad(C, 128) * itemsize
    vmem_need = 2 * (out_blk_pad + pe_blk_pad + x_pad)          # double buffers
    vmem_limit_bytes = int(min(max(2 * vmem_need + (4 << 20), 16 << 20), 64 << 20))

    # ---- inputs ------------------------------------------------------------
    # Positional grid: host-cached constant (channel 0 = y, channel 1 = x),
    # cast to x.dtype to match `gen_2d_pe((h, w)).type_as(x)`.
    pe = jnp.asarray(_linear_pe_np(H, W, jnp.dtype(dtype).name))

    out_bytes = B * C_out * HW * itemsize
    in_bytes = B * C * itemsize + 2 * HW * itemsize
    cost = pl.CostEstimate(flops=0, transcendentals=0,
                           bytes_accessed=out_bytes + in_bytes)

    out_flat = pl.pallas_call(
        _spatial_broadcast_kernel,
        out_shape=jax.ShapeDtypeStruct((B, C_out, HW), dtype),
        grid=(grid_b, grid_hw),
        in_specs=[
            # Whole latent stays resident in VMEM (tiny; no lane-1 padding blowup).
            pl.BlockSpec((B, C), lambda b, s: (0, 0)),
            # Positional grid tiled along the flattened spatial (lane) axis.
            pl.BlockSpec((2, block_hw), lambda b, s: (0, s)),
        ],
        out_specs=pl.BlockSpec((block_b, C_out, block_hw), lambda b, s: (b, 0, s)),
        compiler_params=pltpu.CompilerParams(
            dimension_semantics=("parallel", "parallel"),
            vmem_limit_bytes=vmem_limit_bytes,
        ),
        cost_estimate=cost,
    )(x, pe)

    # Free reshape back to BCHW (identical row-major layout).
    return out_flat.reshape(B, C_out, H, W)


def _reference(x: jax.Array, sz):
    """Pure-JAX reference mirroring the PyTorch forward (pe_type='linear')."""
    H, W = sz
    B, C = x.shape
    ys = jnp.linspace(-1.0, 1.0, H, dtype=jnp.float32)
    xs = jnp.linspace(-1.0, 1.0, W, dtype=jnp.float32)
    grid_y, grid_x = jnp.meshgrid(ys, xs, indexing="ij")          # (H, W) each
    pe = jnp.stack([grid_y, grid_x], axis=0).astype(x.dtype)      # (2, H, W)
    pe = jnp.broadcast_to(pe[None], (B, 2, H, W))                 # (B, 2, H, W)
    feat = jnp.broadcast_to(x[:, :, None, None], (B, C, H, W))    # (B, C, H, W)
    return jnp.concatenate([pe, feat], axis=1)                    # (B, C+2, H, W)


if __name__ == "__main__":
    key = jax.random.PRNGKey(0)
    B, C = 2, 4
    H, W = 16, 16
    x = jax.random.normal(key, (B, C), dtype=jnp.float32)

    out = spatial_broadcast(x, (H, W))
    out = jax.block_until_ready(out)

    ref = _reference(x, (H, W))
    assert out.shape == (B, C + 2, H, W), out.shape
    np.testing.assert_allclose(np.asarray(out), np.asarray(ref), rtol=1e-6, atol=1e-6)

    print("KERNEL_OK")
</pallas_src>

<mosaic_0001>
module attributes {stable_mosaic.version = 11 : i64} {
  func.func @_spatial_broadcast_kernel(%arg0: i32, %arg1: i32, %arg2: memref<2x4xf32, #tpu.memory_space<vmem>>, %arg3: memref<2x256xf32, #tpu.memory_space<vmem>>, %arg4: memref<1x6x256xf32, #tpu.memory_space<vmem>>) attributes {dimension_semantics = [#tpu.dimension_semantics<parallel>, #tpu.dimension_semantics<parallel>], iteration_bounds = array<i64: 2, 1>, scalar_prefetch = 0 : i64, scratch_operands = 0 : i64, tpu.core_type = #tpu.core_type<tc>, window_params = [{pipeline_mode = #tpu.pipeline_mode<synchronous>, transform_indices = @transform_0, window_bounds = array<i64: 2, 4>}, {transform_indices = @transform_1, window_bounds = array<i64: 2, 256>}, {transform_indices = @transform_2, window_bounds = array<i64: 1, 6, 256>}]} {
    %c1_i32 = arith.constant 1 : i32
    %0 = arith.muli %arg0, %c1_i32 : i32
    %1 = tpu.assume_multiple %0, 1 : i32
    %2 = arith.index_cast %1 : i32 to index
    %c0 = arith.constant 0 : index
    %3 = vector.load %arg2[%2, %c0] : memref<2x4xf32, #tpu.memory_space<vmem>>, vector<1x4xf32>
    %c0_0 = arith.constant 0 : index
    %c0_1 = arith.constant 0 : index
    %4 = vector.load %arg3[%c0_0, %c0_1] : memref<2x256xf32, #tpu.memory_space<vmem>>, vector<2x256xf32>
    %5 = vector.shape_cast %4 : vector<2x256xf32> to vector<1x2x256xf32>
    %6 = vector.shape_cast %3 : vector<1x4xf32> to vector<1x4x1xf32>
    %7 = vector.shape_cast %6 : vector<1x4x1xf32> to vector<1x4x1xf32>
    %8 = vector.broadcast %7 : vector<1x4x1xf32> to vector<1x4x256xf32>
    %9 = tpu.concatenate %5, %8 in 1 : vector<1x2x256xf32>, vector<1x4x256xf32> -> vector<1x6x256xf32>
    %c0_2 = arith.constant 0 : index
    %c0_3 = arith.constant 0 : index
    %c0_4 = arith.constant 0 : index
    %10 = vector.load %arg4[%c0_2, %c0_3, %c0_4] : memref<1x6x256xf32, #tpu.memory_space<vmem>>, vector<1x6x256xf32>
    tpu.vector_store %arg4[%c0_2, %c0_3, %c0_4], %9 {strides = array<i32>} : memref<1x6x256xf32, #tpu.memory_space<vmem>>, vector<1x6x256xf32>,
    return
  }
  func.func @transform_0(%arg0: i32, %arg1: i32) -> (i32, i32) {
    %c0_i32 = arith.constant 0 : i32
    %c0_i32_0 = arith.constant 0 : i32
    %c0_i32_1 = arith.constant 0 : i32
    return %c0_i32, %c0_i32_0 : i32, i32
  }
  func.func @transform_1(%arg0: i32, %arg1: i32) -> (i32, i32) {
    %c0_i32 = arith.constant 0 : i32
    %c0_i32_0 = arith.constant 0 : i32
    return %c0_i32, %arg1 : i32, i32
  }
  func.func @transform_2(%arg0: i32, %arg1: i32) -> (i32, i32, i32) {
    %c0_i32 = arith.constant 0 : i32
    %c0_i32_0 = arith.constant 0 : i32
    return %arg0, %c0_i32, %arg1 : i32, i32, i32
  }
}

</mosaic_0001>

<llo_original>
// kernel: tpu_custom_call.1
$region0: #{tpu_custom_call.1}
  #allocation0 [shape = 'u32[]', space=smem, size = 0x4, offset = 0x4, fixed_abs, tag = 'smem constant byte address 0x4 - core index']
  #allocation1 [shape = 'u32[144,128]{1,0:T(1,128)}', space=vmem, size = 0x12000, scoped, tag = 'internal scratch']
  %s0 = inlined_call_operand.hbm [shape: f32[2,4], index: 0, kind: input, shape index: {}]
  %s1 = inlined_call_operand.hbm [shape: f32[2,256], index: 1, kind: input, shape index: {}]
  %s2 = inlined_call_operand.vmem [shape: f32[2,6,256], index: 2, kind: output, shape index: {}]
  %s3 = sld [smem:[#allocation0]]
  $region49: #{tpu_custom_call.1} parent=0
    _
  %s5 = ssub.s32 1, %s3
  %s6 = scalar_select 0, %s5, %s3
  $region1: #{tpu_custom_call.1} parent=0
    #allocation2 [shape = 'u8[1024]{0}', space=vmem, size = 0x400, scoped, tag = 'input window, operand 0, single buffered']
    #allocation3 [shape = 's32[2]{0}', space=sflag, size = 0x8, scoped, tag = 'scoped memory for tpu_custom_call.1']
    #allocation4 [shape = 'u8[2048]{0}', space=vmem, size = 0x800, scoped, tag = 'input window, operand 1, single buffered']
    #allocation5 [shape = 's32[1]{0}', space=sflag, size = 0x4, scoped, tag = 'scoped memory for tpu_custom_call.1']
    %7 = vsyncpa [#allocation3], 0
    %8 = vsyncpa [#allocation5], 0
    loop: start=0, step=1, limit=4
    $region2: #{tpu_custom_call.1} parent=1 // loop_pre_header
      _
    $region3: #{tpu_custom_call.1} parent=1 // loop_header
      %s10 = sphi 0, %s14
      %p11 = scmp.ge.s32.totalorder %s10, 4
      %s17 = sphi 0, %s29
      %s18 = sphi 0, %s25
      %s19 = sphi 0, %s17
      %s20 = sphi 0, %s18
      %s21 = sphi 0, %s19
      %s22 = sphi 0, %s20
      %s30 = sphi 0, %s30
      %s32 = sphi 0, %s30
      %s33 = sphi 0, %s32
      %s47 = sphi 0, %s33
      %s53 = sphi 0, %s55
      %s56 = sphi 0, %s53
      %s57 = sphi 0, %s56
      %s73 = sphi 0, %s57
      %s81 = sphi 0, %s83
      %s84 = sphi 0, %s81
      %s85 = sphi 0, %s84
      %s101 = sphi 0, %s85
    $region4: #{tpu_custom_call.1} parent=1 // loop_header_branch
      %13 = sbr.rel (%p11) target = $region8
    $region5: #{tpu_custom_call.1} parent=1 // loop_body
      %s15 = ssub.s32 %s10, 1
      %s16 = ssub.s32 %s10, 2
      %s23 = sadd.s32 1, %s18
      %p24 = scmp.ge.s32.totalorder %s23, 1
      %s25 = scalar_select %p24, 0, %s23
      %s26 = sadd.s32 1, %s17
      %s27 = scalar_select %p24, %s26, %s17
      %p28 = scmp.ge.s32.totalorder %s27, 2
      %s29 = scalar_select %p28, 0, %s27
      %s31 = sadd.s32 %s30, 1
      %p34 = scmp.eq.s32.totalorder %s10, 1
      %p35 = scmp.ne.s32.totalorder %s30, %s32
      %p36 = scmp.eq.s32.totalorder %s10, 0
      %p37 = por %p35, %p36
      %p38 = scmp.ne.s32.totalorder %s30, %s32
      %p39 = scmp.eq.s32.totalorder %s15, 1
      %p40 = por %p38, %p39
      %p41 = scmp.ne.s32.totalorder %s32, %s33
      %p42 = scmp.eq.s32.totalorder %s15, 0
      %p43 = por %p41, %p42
      %p44 = scmp.ne.s32.totalorder %s32, %s33
      %p45 = scmp.eq.s32.totalorder %s16, 1
      %p46 = por %p44, %p45
      %p48 = scmp.ne.s32.totalorder %s33, %s47
      %p49 = scmp.eq.s32.totalorder %s16, 0
      %p50 = por %p48, %p49
      %s51 = ssub.s32 %s18, %s25
      %p52 = scmp.eq.s32.totalorder %s51, 0
      %s54 = sadd.s32 %s53, 1
      %s55 = scalar_select %p52, %s53, %s54
      %p58 = pneg %p52
      %p59 = scmp.eq.s32.totalorder %s10, 1
      %p60 = por %p58, %p59
      %p61 = scmp.ne.s32.totalorder %s53, %s56
      %p62 = scmp.eq.s32.totalorder %s10, 0
      %p63 = por %p61, %p62
      %p64 = scmp.ne.s32.totalorder %s53, %s56
      %p65 = scmp.eq.s32.totalorder %s15, 1
      %p66 = por %p64, %p65
      %p67 = scmp.ne.s32.totalorder %s56, %s57
      %p68 = scmp.eq.s32.totalorder %s15, 0
      %p69 = por %p67, %p68
      %p70 = scmp.ne.s32.totalorder %s56, %s57
      %p71 = scmp.eq.s32.totalorder %s16, 1
      %p72 = por %p70, %p71
      %p74 = scmp.ne.s32.totalorder %s57, %s73
      %p75 = scmp.eq.s32.totalorder %s16, 0
      %p76 = por %p74, %p75
      %s77 = ssub.s32 %s17, %s29
      %s78 = ssub.s32 %s18, %s25
      %s79 = sor.u32 %s77, %s78
      %p80 = scmp.eq.s32.totalorder %s79, 0
      %s82 = sadd.s32 %s81, 1
      %s83 = scalar_select %p80, %s81, %s82
      %p86 = pneg %p80
      %p87 = scmp.eq.s32.totalorder %s10, 1
      %p88 = por %p86, %p87
      %p89 = scmp.ne.s32.totalorder %s81, %s84
      %p90 = scmp.eq.s32.totalorder %s10, 0
      %p91 = por %p89, %p90
      %p92 = scmp.ne.s32.totalorder %s81, %s84
      %p93 = scmp.eq.s32.totalorder %s15, 1
      %p94 = por %p92, %p93
      %p95 = scmp.ne.s32.totalorder %s84, %s85
      %p96 = scmp.eq.s32.totalorder %s15, 0
      %p97 = por %p95, %p96
      %p98 = scmp.ne.s32.totalorder %s84, %s85
      %p99 = scmp.eq.s32.totalorder %s16, 1
      %p100 = por %p98, %p99
      %p102 = scmp.ne.s32.totalorder %s85, %s101
      %p103 = scmp.eq.s32.totalorder %s16, 0
      %p104 = por %p102, %p103
      %p105 = scmp.le.s32.totalorder 1, %s10
      %p106 = scmp.lt.s32.totalorder %s10, 3
      %p107 = pnand %p105, %p106
      %p108 = pneg %p107
      // Predicated region
      $region9: #{tpu_custom_call.1} parent=5 // pred_check
        _
      $region10: #{tpu_custom_call.1} parent=5 // pred_check_branch
        %110 = sbr.rel (%p107) target = $region12
      $region11: #{tpu_custom_call.1} parent=5 // pred_region
        %s111 = ssub.s32 %s10, 1
        // Predicated region
        $region13: #{tpu_custom_call.1} parent=11 // pred_check
          %p112 = pneg %p43
        $region14: #{tpu_custom_call.1} parent=11 // pred_check_branch
          %114 = sbr.rel (%p112) target = $region16
        $region15: #{tpu_custom_call.1} parent=11 // pred_region
          %s116 = ssub.s32 32, 32
          %117 = vsyncadd [#allocation3], %s116
          %s119 = sshll.u32 [#allocation2], 4
          %s120 = int_to_ptr.vmem [resolvable:$true] %s119
          %122 = dma.hbm_to_vmem [thread:$0]  %s0, 32, %s120, [#allocation3]
        $region16: #{tpu_custom_call.1} parent=11 // pred_fallthru
          _
        // Predicated region
        $region17: #{tpu_custom_call.1} parent=11 // pred_check
          %p123 = pneg %p69
        $region18: #{tpu_custom_call.1} parent=11 // pred_check_branch
          %125 = sbr.rel (%p123) target = $region20
        $region19: #{tpu_custom_call.1} parent=11 // pred_region
          %s126 = smul.u32 2, %s20
          %s128 = ssub.s32 64, 64
          %129 = vsyncadd [#allocation5], %s128
          %s130 = smul.addr %s126, 32
          %s131 = scalar_lea.hbm %s1, %s130
          %s133 = sshll.u32 [#allocation4], 4
          %s134 = int_to_ptr.vmem [resolvable:$true] %s133
          %136 = dma.hbm_to_vmem [thread:$0]  %s131, 64, %s134, [#allocation5]
        $region20: #{tpu_custom_call.1} parent=11 // pred_fallthru
          _
      $region12: #{tpu_custom_call.1} parent=5 // pred_fallthru
        _
      %p137 = scmp.lt.s32.totalorder %s10, 2
      // Predicated region
      $region21: #{tpu_custom_call.1} parent=5 // pred_check
        %p138 = pneg %p137
      $region22: #{tpu_custom_call.1} parent=5 // pred_check_branch
        %140 = sbr.rel (%p138) target = $region24
      $region23: #{tpu_custom_call.1} parent=5 // pred_region
        _
      $region24: #{tpu_custom_call.1} parent=5 // pred_fallthru
        _
      %p141 = scmp.le.s32.totalorder 1, %s10
      %p142 = scmp.lt.s32.totalorder %s10, 3
      %p143 = pnand %p141, %p142
      %p144 = pneg %p143
      // Predicated region
      $region25: #{tpu_custom_call.1} parent=5 // pred_check
        _
      $region26: #{tpu_custom_call.1} parent=5 // pred_check_branch
        %146 = sbr.rel (%p143) target = $region28
      $region27: #{tpu_custom_call.1} parent=5 // pred_region
        %s147 = ssub.s32 %s10, 1
        // Predicated region
        $region29: #{tpu_custom_call.1} parent=27 // pred_check
          %p148 = pneg %p43
        $region30: #{tpu_custom_call.1} parent=27 // pred_check_branch
          %150 = sbr.rel (%p148) target = $region32
        $region31: #{tpu_custom_call.1} parent=27 // pred_region
          %151 = dma.done [#allocation3], 32
        $region32: #{tpu_custom_call.1} parent=27 // pred_fallthru
          _
        // Predicated region
        $region33: #{tpu_custom_call.1} parent=27 // pred_check
          %p152 = pneg %p69
        $region34: #{tpu_custom_call.1} parent=27 // pred_check_branch
          %154 = sbr.rel (%p152) target = $region36
        $region35: #{tpu_custom_call.1} parent=27 // pred_region
          %155 = dma.done [#allocation5], 64
        $region36: #{tpu_custom_call.1} parent=27 // pred_fallthru
          _
        %p156 = pneg %p43
        %p157 = pneg %p40
        %p158 = pneg %p69
        %p159 = pneg %p66
        %p160 = pneg %p97
        %p161 = pneg %p94
        %s162 = smul.u32 2, %s20
        %p163 = scmp.lt.s32.totalorder %s19, 1
        %s164 = scalar_select %p163, %s19, 1
        %p165 = scmp.lt.s32.totalorder %s162, 1
        %s166 = scalar_select %p165, %s162, 1
        %s167 = smul.addr %s164, 2
        %s168 = sadd.s32 %s166, %s167
        %s169 = smul.addr %s168, 8
        %s170 = scalar_lea.vmem %s2, %s169
        %s171 = smul.u32 2, %s20
        %s172 = smul.u32 2, %s20
        %p173 = scmp.lt.s32.totalorder %s19, 1
        %s174 = scalar_select %p173, %s19, 1
        %p175 = scmp.lt.s32.totalorder %s172, 1
        %s176 = scalar_select %p175, %s172, 1
        %s177 = smul.addr %s174, 2
        %s178 = sadd.s32 %s176, %s177
        %s179 = smul.addr %s178, 8
        %s180 = scalar_lea.vmem %s2, %s179
        %s181 = smul.u32 2, %s20
        %s182 = scalar_lea.vmem [#allocation2], %s19
        %v183 = vld [vmem:[%s182] sm:$0x1]
        %v184 = vld [vmem:[#allocation4] sm:$0xf]
        %v185 = vlaneseq
        %v186 = vshrl.u32 %v185, 7
        %v187 = vsub.s32 0, %v186
        %v188 = vrot.slane %v183, %v187
        %190 = vbcast.lane.b32.xlu0 %v188, 256
        %v191 = vpop.permute.xlu0 %190
        %v194 = vunpack.c.l.s4 1983009808
        %v195 = vunpack.c.0.s8 %v194
        %v196 = vlaneseq
        %v197 = vshrl.u32 %v196, 7
        %v198 = vsub.s32 %v195, %v197
        %v199 = vrot.slane %v184, %v198
        %v200 = vcombine.high %v199, %v199
        %v204 = vrot.slane %v191, 6
        %vm206 = vcmask 1041408
        %v207 = vsel %vm206, %v199, %v204
        %v208 = vsel %vm206, %v200, %v204
        %209 = vst [vmem:[%s180] sm:$0x3f] %v207
        %210 = vst [vmem:[%s180 + $0x8] sm:$0x3f] %v208
        %s211 = smul.u32 2, %s20
        %p212 = scmp.lt.s32.totalorder %s19, 1
        %s213 = scalar_select %p212, %s19, 1
        %p214 = scmp.lt.s32.totalorder %s211, 1
        %s215 = scalar_select %p214, %s211, 1
        %s216 = smul.addr %s213, 2
        %s217 = sadd.s32 %s215, %s216
        %s218 = smul.addr %s217, 8
        %s219 = scalar_lea.vmem %s2, %s218
        // Predicated region
        $region37: #{tpu_custom_call.1} parent=27 // pred_check
          %p220 = pneg %p94
        $region38: #{tpu_custom_call.1} parent=27 // pred_check_branch
          %222 = sbr.rel (%p220) target = $region40
        $region39: #{tpu_custom_call.1} parent=27 // pred_region
          %s223 = smul.u32 2, %s20
        $region40: #{tpu_custom_call.1} parent=27 // pred_fallthru
          _
      $region28: #{tpu_custom_call.1} parent=5 // pred_fallthru
        _
      %p224 = scmp.le.s32.totalorder 2, %s10
      // Predicated region
      $region41: #{tpu_custom_call.1} parent=5 // pred_check
        %p225 = pneg %p224
      $region42: #{tpu_custom_call.1} parent=5 // pred_check_branch
        %227 = sbr.rel (%p225) target = $region44
      $region43: #{tpu_custom_call.1} parent=5 // pred_region
        %s228 = ssub.s32 %s10, 2
        // Predicated region
        $region45: #{tpu_custom_call.1} parent=43 // pred_check
          %p229 = pneg %p100
        $region46: #{tpu_custom_call.1} parent=43 // pred_check_branch
          %231 = sbr.rel (%p229) target = $region48
        $region47: #{tpu_custom_call.1} parent=43 // pred_region
          %s232 = smul.u32 2, %s22
          %p233 = scmp.lt.s32.totalorder %s21, 1
          %s234 = scalar_select %p233, %s21, 1
          %p235 = scmp.lt.s32.totalorder %s232, 1
          %s236 = scalar_select %p235, %s232, 1
          %s237 = smul.addr %s234, 2
          %s238 = sadd.s32 %s236, %s237
          %s239 = smul.addr %s238, 8
          %s240 = scalar_lea.vmem %s2, %s239
        $region48: #{tpu_custom_call.1} parent=43 // pred_fallthru
          _
      $region44: #{tpu_custom_call.1} parent=5 // pred_fallthru
        _
    $region6: #{tpu_custom_call.1} parent=1 // loop_footer
      %s14 = sadd.s32 1, %s10
    $region7: #{tpu_custom_call.1} parent=1 // loop_footer_branch
      %9 = sbr.rel target = $region3
    $region8: #{tpu_custom_call.1} parent=1 // loop_exit
      _
    %241 = vsyncpa [#allocation3], 1
    %s242 = scalar_lea.sflag [#allocation3], 1
    %243 = vsyncpa %s242, 1
    %244 = vsyncpa [#allocation5], 1

</llo_original>
